<compile_context>
chip_gen: v5e
topology: v5e:2x2
jax: 0.10.0
libtpu: 0.0.40
codegen_flags: <defaults>
</compile_context>

<pallas_src>
import jax
import jax.numpy as jnp
from jax.experimental import pallas as pl
from jax.experimental.pallas import tpu as pltpu

LANE = 128  # TPU vreg lane width


def _round_up(n: int, m: int) -> int:
    return ((n + m - 1) // m) * m


# ----------------------------------------------------------------------------
# Kernel
# ----------------------------------------------------------------------------
def _make_fcnet_kernel(num_layers: int, k_dims, n_dims):
    """Fused kernel: x -> merged (logits | value) output slab.

    Refs: (x, w_stack, b_stack, out).  w_stack is (L, K_max, N_max) bf16,
    b_stack is (L, 1, N_max) f32; layer i uses the top-left (k_i, n_i) block
    (all k_i / n_i are multiples of (8, 128) => tile-aligned static slices).
    Tanh after every layer except the merged head.
    """

    def kernel(x_ref, w_ref, b_ref, out_ref):
        h = x_ref[...]                                   # bf16 (tile_b, K0)
        for i in range(num_layers):
            k, n = k_dims[i], n_dims[i]
            w = w_ref[i, :k, :n]                         # bf16 (k, n)
            b = b_ref[i, :, :n]                          # f32  (1, n)
            y = jnp.dot(h, w, preferred_element_type=jnp.float32) + b
            if i < num_layers - 1:                       # trunk layer: Tanh
                h = jnp.tanh(y).astype(jnp.bfloat16)
            else:                                        # merged head
                out_ref[...] = y.astype(out_ref.dtype)

    return kernel


# ----------------------------------------------------------------------------
# Fused / packed parameter construction
# ----------------------------------------------------------------------------
def _build_fused_params(pi_w, pi_b, v_w, v_b):
    """Fuse pi/v networks into one stack of lane-padded bf16 weights.

    Layer 0:          [W0_pi | W0_v]                (in_pad, 2*H0_pad)
    Trunk layer i>0:  blockdiag(Wi_pi, Wi_v)        (2*H_{i-1}_pad, 2*H_i_pad)
    Head:             pi head in cols [0, num_out), v head in col num_out
                      (2*H_{L-2}_pad, out_pad)
    Returns (w_stack bf16 (L,K_max,N_max), b_stack f32 (L,1,N_max),
             k_dims, n_dims, in_pad, out_pad, num_out).
    """
    L = len(pi_w)
    num_inp = pi_w[0].shape[0]
    num_out = pi_w[-1].shape[1]

    in_pad = _round_up(num_inp, LANE)
    hid = [w.shape[1] for w in pi_w[:-1]]                # trunk widths
    hid_pad = [_round_up(h, LANE) for h in hid]
    out_pad = _round_up(num_out + 1, LANE)               # +1 col for value

    k_dims, n_dims, fused = [], [], []
    for i in range(L):
        k = in_pad if i == 0 else 2 * hid_pad[i - 1]
        n = out_pad if i == L - 1 else 2 * hid_pad[i]
        k_dims.append(k)
        n_dims.append(n)

        w = jnp.zeros((k, n), jnp.float32)
        b = jnp.zeros((1, n), jnp.float32)
        if i == 0:
            r_pi, r_v, rows = 0, 0, num_inp              # both read raw obs
        else:
            r_pi, r_v, rows = 0, hid_pad[i - 1], hid[i - 1]

        if i < L - 1:                                    # trunk layer
            hp, hcur = hid_pad[i], hid[i]
            w = w.at[r_pi:r_pi + rows, :hcur].set(pi_w[i])
            w = w.at[r_v:r_v + rows, hp:hp + hcur].set(v_w[i])
            b = b.at[:, :hcur].set(pi_b[i])
            b = b.at[:, hp:hp + hcur].set(v_b[i])
        else:                                            # merged head
            w = w.at[r_pi:r_pi + rows, :num_out].set(pi_w[i])
            w = w.at[r_v:r_v + rows, num_out:num_out + 1].set(v_w[i])
            b = b.at[:, :num_out].set(pi_b[i])
            b = b.at[:, num_out:num_out + 1].set(v_b[i])
        fused.append((w, b))

    k_max, n_max = max(k_dims), max(n_dims)
    w_stack = jnp.zeros((L, k_max, n_max), jnp.bfloat16)
    b_stack = jnp.zeros((L, 1, n_max), jnp.float32)
    for i, (w, b) in enumerate(fused):
        w_stack = w_stack.at[i, :k_dims[i], :n_dims[i]].set(w.astype(jnp.bfloat16))
        b_stack = b_stack.at[i, :, :n_dims[i]].set(b)
    return w_stack, b_stack, k_dims, n_dims, in_pad, out_pad, num_out


def _choose_tile_b(batch: int) -> int:
    """Adaptive batch tile: single step for small rollout batches, >=2 steps
    (pipelining + v7x megacore) once the batch is large, capped well under
    scoped VMEM."""
    b16 = _round_up(max(batch, 8), 16)
    if b16 <= 256:
        return b16
    return min(1024, _round_up((b16 + 1) // 2, 16))


# ----------------------------------------------------------------------------
# Wrapper
# ----------------------------------------------------------------------------
def fcnet_forward(x, pi_weights, pi_biases, v_weights, v_biases, *,
                  tile_b: int | None = None):
    """FCNet.forward (lstm=False, dropout_pct=0) on TPU.

    x:          (batch, num_inp) float32 observations
    *_weights:  list of (in_i, out_i) float32 (transposed vs. PyTorch Linear)
    *_biases:   list of (1, out_i) float32
    Returns (logits (batch, num_out) f32, values (batch,) f32).
    """
    num_layers = len(pi_weights)
    assert num_layers == len(v_weights) and num_layers >= 1

    batch, num_inp = x.shape
    (w_stack, b_stack, k_dims, n_dims,
     in_pad, out_pad, num_out) = _build_fused_params(
        pi_weights, pi_biases, v_weights, v_biases)

    if tile_b is None:
        tile_b = _choose_tile_b(batch)
    tile_b = max(8, _round_up(tile_b, 8))
    b_pad = _round_up(batch, tile_b)

    # bf16 observations: half the input DMA bytes; cast fuses into the pad op.
    x_p = jnp.pad(x.astype(jnp.bfloat16),
                  ((0, b_pad - batch), (0, in_pad - num_inp)))

    grid = (b_pad // tile_b,)
    L, k_max, n_max = w_stack.shape

    in_specs = [
        pl.BlockSpec((tile_b, in_pad), lambda i: (i, 0)),          # x tile
        pl.BlockSpec((L, k_max, n_max), lambda i: (0, 0, 0)),      # weights
        pl.BlockSpec((L, 1, n_max), lambda i: (0, 0, 0)),          # biases
    ]
    out_specs = pl.BlockSpec((tile_b, out_pad), lambda i: (i, 0))
    out_shape = jax.ShapeDtypeStruct((b_pad, out_pad), jnp.bfloat16)

    # Advisory cost estimate so XLA can schedule around the custom call.
    flops = sum(2 * b_pad * k * n for k, n in zip(k_dims, n_dims))
    transc = b_pad * sum(n_dims[:-1])                    # tanh per element
    bytes_accessed = (int(x_p.size) * 2 + int(w_stack.size) * 2
                      + int(b_stack.size) * 4 + b_pad * out_pad * 2)

    # VMEM budget: double-buffered x/out tiles + (double-buffered) params.
    vmem_need = (2 * tile_b * in_pad * 2 + 2 * tile_b * out_pad * 2
                 + 2 * (int(w_stack.size) * 2 + int(b_stack.size) * 4)
                 + (2 << 20))                            # activation headroom
    vmem_limit = int(min(vmem_need, 56 << 20)) if vmem_need > (24 << 20) else None

    kernel = _make_fcnet_kernel(num_layers, tuple(k_dims), tuple(n_dims))

    out = pl.pallas_call(
        kernel,
        grid=grid,
        in_specs=in_specs,
        out_specs=out_specs,
        out_shape=out_shape,
        compiler_params=pltpu.CompilerParams(
            dimension_semantics=("parallel",),           # megacore on v7x
            vmem_limit_bytes=vmem_limit),
        cost_estimate=pl.CostEstimate(flops=int(flops),
                                      transcendentals=int(transc),
                                      bytes_accessed=int(bytes_accessed)),
    )(x_p, w_stack, b_stack)

    out_f32 = out[:batch].astype(jnp.float32)
    logits = out_f32[:, :num_out]
    values = out_f32[:, num_out]                         # (B,1) head .squeeze(1)
    return logits, values


# ----------------------------------------------------------------------------
# Parameter construction mirroring MLPNet.__init__ + init_modules (xavier
# uniform weights, bias filled with 0.01), and a pure-JAX f32 reference.
# ----------------------------------------------------------------------------
def _xavier_uniform(key, fan_in, fan_out):
    bound = (6.0 / (fan_in + fan_out)) ** 0.5
    return jax.random.uniform(key, (fan_in, fan_out), jnp.float32,
                              -bound, bound)


def make_mlp_params(key, num_inp, num_out, hiddens):
    sizes = [num_inp] + list(hiddens)
    layer_dims = list(zip(sizes[:-1], sizes[1:]))        # trunk linears
    head_in = hiddens[-1] if hiddens else num_inp
    layer_dims.append((head_in, num_out))                # head linear
    weights, biases = [], []
    for fan_in, fan_out in layer_dims:
        key, sub = jax.random.split(key)
        weights.append(_xavier_uniform(sub, fan_in, fan_out))
        biases.append(jnp.full((1, fan_out), 0.01, jnp.float32))
    return weights, biases


def reference_fcnet_forward(x, pi_w, pi_b, v_w, v_b):
    def mlp(h, ws, bs):
        for i, (w, b) in enumerate(zip(ws, bs)):
            h = h @ w + b
            if i < len(ws) - 1:
                h = jnp.tanh(h)
        return h
    logits = mlp(x, pi_w, pi_b)
    values = mlp(x, v_w, v_b)[:, 0]
    return logits, values


if __name__ == "__main__":
    # FCNet(obs_space=Box(32,), num_outputs=16,
    #       model_config={"fcnet_hiddens": [32, 32]},
    #       lstm=False, dropout_pct=0.0, act_cls=nn.Tanh)
    # TODO(synk): lstm=True path (LSTMNet / nn.LSTM) and dropout_pct > 0
    #             (train-mode nn.Dropout) are not implemented in this kernel.
    num_inp, num_out = 32, 16
    hiddens = [32, 32]
    batch = 80                      # small RL rollout batch (not tile-aligned)

    key = jax.random.PRNGKey(0)
    key, xkey, pikey, vkey = jax.random.split(key, 4)

    x = jax.random.normal(xkey, (batch, num_inp), dtype=jnp.float32)
    pi_w, pi_b = make_mlp_params(pikey, num_inp, num_out, hiddens)
    v_w, v_b = make_mlp_params(vkey, num_inp, 1, hiddens)

    ref_logits, ref_values = reference_fcnet_forward(x, pi_w, pi_b, v_w, v_b)

    # Path 1: explicit small tile -> multi-step grid (exercises pipelining,
    # batch padding and the "parallel" axis).
    logits, values = fcnet_forward(x, pi_w, pi_b, v_w, v_b, tile_b=32)
    logits, values = jax.block_until_ready((logits, values))
    assert logits.shape == (batch, num_out)
    assert values.shape == (batch,)
    # bf16 MXU operands + bf16 output -> ~1e-2-level deviation vs f32 ref.
    assert jnp.allclose(logits, ref_logits, atol=6e-2, rtol=6e-2), \
        float(jnp.max(jnp.abs(logits - ref_logits)))
    assert jnp.allclose(values, ref_values, atol=6e-2, rtol=6e-2), \
        float(jnp.max(jnp.abs(values - ref_values)))

    # Path 2: adaptive tile (single grid step for this small rollout batch).
    logits2, values2 = fcnet_forward(x, pi_w, pi_b, v_w, v_b)
    logits2, values2 = jax.block_until_ready((logits2, values2))
    assert jnp.allclose(logits2, ref_logits, atol=6e-2, rtol=6e-2)
    assert jnp.allclose(values2, ref_values, atol=6e-2, rtol=6e-2)

    print("KERNEL_OK")
</pallas_src>

<mosaic_0001>
module attributes {stable_mosaic.version = 11 : i64} {
  func.func @kernel(%arg0: i32, %arg1: memref<32x128xbf16, #tpu.memory_space<vmem>>, %arg2: memref<3x256x256xbf16, #tpu.memory_space<vmem>>, %arg3: memref<3x1x256xf32, #tpu.memory_space<vmem>>, %arg4: memref<32x128xbf16, #tpu.memory_space<vmem>>) attributes {dimension_semantics = [#tpu.dimension_semantics<parallel>], iteration_bounds = array<i64: 3>, scalar_prefetch = 0 : i64, scratch_operands = 0 : i64, tpu.core_type = #tpu.core_type<tc>, window_params = [{transform_indices = @transform_0, window_bounds = array<i64: 32, 128>}, {pipeline_mode = #tpu.pipeline_mode<synchronous>, transform_indices = @transform_1, window_bounds = array<i64: 3, 256, 256>}, {pipeline_mode = #tpu.pipeline_mode<synchronous>, transform_indices = @transform_2, window_bounds = array<i64: 3, 1, 256>}, {transform_indices = @transform_3, window_bounds = array<i64: 32, 128>}]} {
    %c0 = arith.constant 0 : index
    %c0_0 = arith.constant 0 : index
    %0 = vector.load %arg1[%c0, %c0_0] : memref<32x128xbf16, #tpu.memory_space<vmem>>, vector<32x128xbf16>
    %c0_1 = arith.constant 0 : index
    %c0_2 = arith.constant 0 : index
    %c0_3 = arith.constant 0 : index
    %1 = vector.load %arg2[%c0_1, %c0_2, %c0_3] : memref<3x256x256xbf16, #tpu.memory_space<vmem>>, vector<1x128x256xbf16>
    %2 = vector.shape_cast %1 : vector<1x128x256xbf16> to vector<128x256xbf16>
    %c0_4 = arith.constant 0 : index
    %c0_5 = arith.constant 0 : index
    %c0_6 = arith.constant 0 : index
    %3 = vector.load %arg3[%c0_4, %c0_5, %c0_6] : memref<3x1x256xf32, #tpu.memory_space<vmem>>, vector<1x1x256xf32>
    %4 = vector.shape_cast %3 : vector<1x1x256xf32> to vector<1x256xf32>
    %cst = arith.constant dense<0.000000e+00> : vector<32x256xf32>
    %5 = tpu.matmul %0, %2, %cst {dimension_numbers = #tpu.dot_dimension_numbers<[1], [0], [0], [1], [0, 0, 1, 1], [], []>} : vector<32x128xbf16>, vector<128x256xbf16>, vector<32x256xf32> -> vector<32x256xf32>
    %6 = vector.broadcast %4 : vector<1x256xf32> to vector<32x256xf32>
    %7 = arith.addf %5, %6 : vector<32x256xf32>
    %8 = math.tanh %7 : vector<32x256xf32>
    %9 = arith.truncf %8 : vector<32x256xf32> to vector<32x256xbf16>
    %c1 = arith.constant 1 : index
    %c0_7 = arith.constant 0 : index
    %c0_8 = arith.constant 0 : index
    %10 = vector.load %arg2[%c1, %c0_7, %c0_8] : memref<3x256x256xbf16, #tpu.memory_space<vmem>>, vector<1x256x256xbf16>
    %11 = vector.shape_cast %10 : vector<1x256x256xbf16> to vector<256x256xbf16>
    %c1_9 = arith.constant 1 : index
    %c0_10 = arith.constant 0 : index
    %c0_11 = arith.constant 0 : index
    %12 = vector.load %arg3[%c1_9, %c0_10, %c0_11] : memref<3x1x256xf32, #tpu.memory_space<vmem>>, vector<1x1x256xf32>
    %13 = vector.shape_cast %12 : vector<1x1x256xf32> to vector<1x256xf32>
    %cst_12 = arith.constant dense<0.000000e+00> : vector<32x256xf32>
    %14 = tpu.matmul %9, %11, %cst_12 {dimension_numbers = #tpu.dot_dimension_numbers<[1], [0], [0], [1], [0, 0, 1, 1], [], []>} : vector<32x256xbf16>, vector<256x256xbf16>, vector<32x256xf32> -> vector<32x256xf32>
    %15 = vector.broadcast %13 : vector<1x256xf32> to vector<32x256xf32>
    %16 = arith.addf %14, %15 : vector<32x256xf32>
    %17 = math.tanh %16 : vector<32x256xf32>
    %18 = arith.truncf %17 : vector<32x256xf32> to vector<32x256xbf16>
    %c2 = arith.constant 2 : index
    %c0_13 = arith.constant 0 : index
    %c0_14 = arith.constant 0 : index
    %19 = vector.load %arg2[%c2, %c0_13, %c0_14] : memref<3x256x256xbf16, #tpu.memory_space<vmem>>, vector<1x256x128xbf16>
    %20 = vector.shape_cast %19 : vector<1x256x128xbf16> to vector<256x128xbf16>
    %c2_15 = arith.constant 2 : index
    %c0_16 = arith.constant 0 : index
    %c0_17 = arith.constant 0 : index
    %21 = vector.load %arg3[%c2_15, %c0_16, %c0_17] : memref<3x1x256xf32, #tpu.memory_space<vmem>>, vector<1x1x128xf32>
    %22 = vector.shape_cast %21 : vector<1x1x128xf32> to vector<1x128xf32>
    %cst_18 = arith.constant dense<0.000000e+00> : vector<32x128xf32>
    %23 = tpu.matmul %18, %20, %cst_18 {dimension_numbers = #tpu.dot_dimension_numbers<[1], [0], [0], [1], [0, 0, 1, 1], [], []>} : vector<32x256xbf16>, vector<256x128xbf16>, vector<32x128xf32> -> vector<32x128xf32>
    %24 = vector.broadcast %22 : vector<1x128xf32> to vector<32x128xf32>
    %25 = arith.addf %23, %24 : vector<32x128xf32>
    %26 = arith.truncf %25 : vector<32x128xf32> to vector<32x128xbf16>
    %c0_19 = arith.constant 0 : index
    %c0_20 = arith.constant 0 : index
    %27 = vector.load %arg4[%c0_19, %c0_20] : memref<32x128xbf16, #tpu.memory_space<vmem>>, vector<32x128xbf16>
    tpu.vector_store %arg4[%c0_19, %c0_20], %26 {strides = array<i32>} : memref<32x128xbf16, #tpu.memory_space<vmem>>, vector<32x128xbf16>,
    return
  }
  func.func @transform_0(%arg0: i32) -> (i32, i32) {
    %c0_i32 = arith.constant 0 : i32
    %c0_i32_0 = arith.constant 0 : i32
    return %arg0, %c0_i32 : i32, i32
  }
  func.func @transform_1(%arg0: i32) -> (i32, i32, i32) {
    %c0_i32 = arith.constant 0 : i32
    %c0_i32_0 = arith.constant 0 : i32
    %c0_i32_1 = arith.constant 0 : i32
    %c0_i32_2 = arith.constant 0 : i32
    return %c0_i32, %c0_i32_0, %c0_i32_1 : i32, i32, i32
  }
  func.func @transform_2(%arg0: i32) -> (i32, i32, i32) {
    %c0_i32 = arith.constant 0 : i32
    %c0_i32_0 = arith.constant 0 : i32
    %c0_i32_1 = arith.constant 0 : i32
    %c0_i32_2 = arith.constant 0 : i32
    return %c0_i32, %c0_i32_0, %c0_i32_1 : i32, i32, i32
  }
  func.func @transform_3(%arg0: i32) -> (i32, i32) {
    %c0_i32 = arith.constant 0 : i32
    %c0_i32_0 = arith.constant 0 : i32
    return %arg0, %c0_i32 : i32, i32
  }
}

</mosaic_0001>

<llo_original>
// kernel: tpu_custom_call.1
$region0: #{tpu_custom_call.1}
  #allocation0 [shape = 'u32[]', space=smem, size = 0x4, offset = 0x4, fixed_abs, tag = 'smem constant byte address 0x4 - core index']
  #allocation1 [shape = 'u32[72,128]{1,0:T(1,128)}', space=vmem, size = 0x9000, scoped, tag = 'internal scratch']
  %s0 = inlined_call_operand.hbm [shape: bf16[96,128], index: 0, kind: input, shape index: {}]
  %s1 = inlined_call_operand.hbm [shape: bf16[3,256,256], index: 1, kind: input, shape index: {}]
  %s2 = inlined_call_operand.hbm [shape: f32[3,1,256], index: 2, kind: input, shape index: {}]
  %s3 = inlined_call_operand.hbm [shape: bf16[96,128], index: 3, kind: output, shape index: {}]
  %s4 = sld [smem:[#allocation0]]
  $region57: #{tpu_custom_call.1} parent=0
    _
  %s6 = ssub.s32 1, %s4
  %s7 = scalar_select 0, %s6, %s4
  $region1: #{tpu_custom_call.1} parent=0
    #allocation2 [shape = 'u8[16384]{0}', space=vmem, size = 0x4000, scoped, tag = 'input window, operand 0']
    #allocation3 [shape = 's32[2]{0}', space=sflag, size = 0x8, scoped, tag = 'scoped memory for tpu_custom_call.1']
    #allocation4 [shape = 's32[2]{0}', space=sflag, size = 0x8, scoped, tag = 'scoped memory for tpu_custom_call.1']
    #allocation5 [shape = 'u8[393216]{0}', space=vmem, size = 0x60000, scoped, tag = 'input window, operand 1, single buffered']
    #allocation6 [shape = 's32[1]{0}', space=sflag, size = 0x4, scoped, tag = 'scoped memory for tpu_custom_call.1']
    #allocation7 [shape = 'u8[3072]{0}', space=vmem, size = 0xc00, scoped, tag = 'input window, operand 2, single buffered']
    #allocation8 [shape = 'u8[16384]{0}', space=vmem, size = 0x4000, scoped, tag = 'output window, operand 0']
    %8 = vsyncpa [#allocation3], 0
    %s9 = scalar_lea.sflag [#allocation3], 1
    %10 = vsyncpa %s9, 0
    %11 = vsyncpa [#allocation6], 0
    %12 = vsyncpa [#allocation4], 0
    %s13 = scalar_lea.sflag [#allocation4], 1
    %14 = vsyncpa %s13, 0
    loop: start=0, step=1, limit=5
    $region2: #{tpu_custom_call.1} parent=1 // loop_pre_header
      _
    $region3: #{tpu_custom_call.1} parent=1 // loop_header
      %s16 = sphi 0, %s20
      %p17 = scmp.ge.s32.totalorder %s16, 5
      %s26 = sphi 0, %s28
      %s29 = sphi 0, %s26
      %s30 = sphi 0, %s29
      %s46 = sphi 0, %s30
      %s50 = sphi 0, %s50
      %s52 = sphi 0, %s50
      %s53 = sphi 0, %s52
      %s67 = sphi 0, %s53
      %s71 = sphi 0, %s71
      %s73 = sphi 0, %s71
      %s74 = sphi 0, %s73
      %s88 = sphi 0, %s74
      %s94 = sphi 0, %s96
      %s97 = sphi 0, %s94
      %s98 = sphi 0, %s97
      %s114 = sphi 0, %s98
    $region4: #{tpu_custom_call.1} parent=1 // loop_header_branch
      %19 = sbr.rel (%p17) target = $region8
    $region5: #{tpu_custom_call.1} parent=1 // loop_body
      %s21 = ssub.s32 %s16, 1
      %s22 = ssub.s32 %s16, 2
      %s23 = sadd.s32 %s16, 1
      %s24 = ssub.s32 %s16, %s23
      %p25 = scmp.eq.s32.totalorder %s24, 0
      %s27 = sadd.s32 %s26, 1
      %s28 = scalar_select %p25, %s26, %s27
      %p31 = pneg %p25
      %p32 = scmp.eq.s32.totalorder %s16, 2
      %p33 = por %p31, %p32
      %p34 = scmp.ne.s32.totalorder %s26, %s29
      %p35 = scmp.eq.s32.totalorder %s16, 0
      %p36 = por %p34, %p35
      %p37 = scmp.ne.s32.totalorder %s26, %s29
      %p38 = scmp.eq.s32.totalorder %s21, 2
      %p39 = por %p37, %p38
      %p40 = scmp.ne.s32.totalorder %s29, %s30
      %p41 = scmp.eq.s32.totalorder %s21, 0
      %p42 = por %p40, %p41
      %p43 = scmp.ne.s32.totalorder %s29, %s30
      %p44 = scmp.eq.s32.totalorder %s22, 2
      %p45 = por %p43, %p44
      %p47 = scmp.ne.s32.totalorder %s30, %s46
      %p48 = scmp.eq.s32.totalorder %s22, 0
      %p49 = por %p47, %p48
      %s51 = sadd.s32 %s50, 1
      %p54 = scmp.eq.s32.totalorder %s16, 2
      %p55 = scmp.ne.s32.totalorder %s50, %s52
      %p56 = scmp.eq.s32.totalorder %s16, 0
      %p57 = por %p55, %p56
      %p58 = scmp.ne.s32.totalorder %s50, %s52
      %p59 = scmp.eq.s32.totalorder %s21, 2
      %p60 = por %p58, %p59
      %p61 = scmp.ne.s32.totalorder %s52, %s53
      %p62 = scmp.eq.s32.totalorder %s21, 0
      %p63 = por %p61, %p62
      %p64 = scmp.ne.s32.totalorder %s52, %s53
      %p65 = scmp.eq.s32.totalorder %s22, 2
      %p66 = por %p64, %p65
      %p68 = scmp.ne.s32.totalorder %s53, %s67
      %p69 = scmp.eq.s32.totalorder %s22, 0
      %p70 = por %p68, %p69
      %s72 = sadd.s32 %s71, 1
      %p75 = scmp.eq.s32.totalorder %s16, 2
      %p76 = scmp.ne.s32.totalorder %s71, %s73
      %p77 = scmp.eq.s32.totalorder %s16, 0
      %p78 = por %p76, %p77
      %p79 = scmp.ne.s32.totalorder %s71, %s73
      %p80 = scmp.eq.s32.totalorder %s21, 2
      %p81 = por %p79, %p80
      %p82 = scmp.ne.s32.totalorder %s73, %s74
      %p83 = scmp.eq.s32.totalorder %s21, 0
      %p84 = por %p82, %p83
      %p85 = scmp.ne.s32.totalorder %s73, %s74
      %p86 = scmp.eq.s32.totalorder %s22, 2
      %p87 = por %p85, %p86
      %p89 = scmp.ne.s32.totalorder %s74, %s88
      %p90 = scmp.eq.s32.totalorder %s22, 0
      %p91 = por %p89, %p90
      %s92 = ssub.s32 %s16, %s23
      %p93 = scmp.eq.s32.totalorder %s92, 0
      %s95 = sadd.s32 %s94, 1
      %s96 = scalar_select %p93, %s94, %s95
      %p99 = pneg %p93
      %p100 = scmp.eq.s32.totalorder %s16, 2
      %p101 = por %p99, %p100
      %p102 = scmp.ne.s32.totalorder %s94, %s97
      %p103 = scmp.eq.s32.totalorder %s16, 0
      %p104 = por %p102, %p103
      %p105 = scmp.ne.s32.totalorder %s94, %s97
      %p106 = scmp.eq.s32.totalorder %s21, 2
      %p107 = por %p105, %p106
      %p108 = scmp.ne.s32.totalorder %s97, %s98
      %p109 = scmp.eq.s32.totalorder %s21, 0
      %p110 = por %p108, %p109
      %p111 = scmp.ne.s32.totalorder %s97, %s98
      %p112 = scmp.eq.s32.totalorder %s22, 2
      %p113 = por %p111, %p112
      %p115 = scmp.ne.s32.totalorder %s98, %s114
      %p116 = scmp.eq.s32.totalorder %s22, 0
      %p117 = por %p115, %p116
      %p118 = scmp.le.s32.totalorder 1, %s16
      %p119 = scmp.lt.s32.totalorder %s16, 4
      %p120 = pnand %p118, %p119
      %p121 = pneg %p120
      // Predicated region
      $region9: #{tpu_custom_call.1} parent=5 // pred_check
        _
      $region10: #{tpu_custom_call.1} parent=5 // pred_check_branch
        %123 = sbr.rel (%p120) target = $region12
      $region11: #{tpu_custom_call.1} parent=5 // pred_region
        %s124 = ssub.s32 %s16, 1
        // Predicated region
        $region13: #{tpu_custom_call.1} parent=11 // pred_check
          %p125 = pneg %p63
        $region14: #{tpu_custom_call.1} parent=11 // pred_check_branch
          %127 = sbr.rel (%p125) target = $region16
        $region15: #{tpu_custom_call.1} parent=11 // pred_region
          %129 = vsyncadd [#allocation6], 0
          %s130 = sshll.u32 %s1, 4
          %s131 = int_to_ptr.hbm [resolvable:$true] %s130
          %s132 = sshll.u32 [#allocation5], 4
          %s133 = int_to_ptr.vmem [resolvable:$true] %s132
          %138 = dma.hbm_to_vmem [thread:$0]  %s131, 12288, %s133, [#allocation6], 128, 128, 8
        $region16: #{tpu_custom_call.1} parent=11 // pred_fallthru
          _
        // Predicated region
        $region17: #{tpu_custom_call.1} parent=11 // pred_check
          %p139 = pneg %p84
        $region18: #{tpu_custom_call.1} parent=11 // pred_check_branch
          %141 = sbr.rel (%p139) target = $region20
        $region19: #{tpu_custom_call.1} parent=11 // pred_region
          %143 = vsyncadd [#allocation6], 0
          %s144 = sshll.u32 %s2, 4
          %s145 = int_to_ptr.hbm [resolvable:$true] %s144
          %s146 = sshll.u32 [#allocation7], 4
          %s147 = int_to_ptr.vmem [resolvable:$true] %s146
          %152 = dma.hbm_to_vmem [thread:$0]  %s145, 96, %s147, [#allocation6], 32, 32, 2
        $region20: #{tpu_custom_call.1} parent=11 // pred_fallthru
          _
      $region12: #{tpu_custom_call.1} parent=5 // pred_fallthru
        _
      %p153 = scmp.lt.s32.totalorder %s16, 3
      // Predicated region
      $region21: #{tpu_custom_call.1} parent=5 // pred_check
        %p154 = pneg %p153
      $region22: #{tpu_custom_call.1} parent=5 // pred_check_branch
        %156 = sbr.rel (%p154) target = $region24
      $region23: #{tpu_custom_call.1} parent=5 // pred_region
        // Predicated region
        $region25: #{tpu_custom_call.1} parent=23 // pred_check
          %p157 = pneg %p36
        $region26: #{tpu_custom_call.1} parent=23 // pred_check_branch
          %159 = sbr.rel (%p157) target = $region28
        $region27: #{tpu_custom_call.1} parent=23 // pred_region
          %s160 = sand.u32 %s26, 1
          %s161 = scalar_lea.sflag [#allocation3], %s160
          %s162 = sand.u32 %s26, 1
          %s163 = smul.addr %s162, 16
          %s164 = scalar_lea.vmem [#allocation2], %s163
          %s165 = smul.u32 4, %s16
          %167 = vsyncadd %s161, 0
          %s168 = smul.addr %s165, 4
          %s169 = scalar_lea.hbm %s0, %s168
          %s170 = sshll.u32 %s169, 4
          %s171 = int_to_ptr.hbm [resolvable:$true] %s170
          %s172 = sshll.u32 %s164, 4
          %s173 = int_to_ptr.vmem [resolvable:$true] %s172
          %178 = dma.hbm_to_vmem [thread:$0]  %s171, 256, %s173, %s161, 64, 64, 4
        $region28: #{tpu_custom_call.1} parent=23 // pred_fallthru
          _
      $region24: #{tpu_custom_call.1} parent=5 // pred_fallthru
        _
      %p179 = scmp.le.s32.totalorder 1, %s16
      %p180 = scmp.lt.s32.totalorder %s16, 4
      %p181 = pnand %p179, %p180
      %p182 = pneg %p181
      // Predicated region
      $region29: #{tpu_custom_call.1} parent=5 // pred_check
        _
      $region30: #{tpu_custom_call.1} parent=5 // pred_check_branch
        %184 = sbr.rel (%p181) target = $region32
      $region31: #{tpu_custom_call.1} parent=5 // pred_region
        %s185 = ssub.s32 %s16, 1
        %s186 = sand.u32 %s29, 1
        %s187 = scalar_lea.sflag [#allocation3], %s186
        %s188 = sand.u32 %s29, 1
        %s189 = smul.addr %s188, 16
        %s190 = scalar_lea.vmem [#allocation2], %s189
        // Predicated region
        $region33: #{tpu_custom_call.1} parent=31 // pred_check
          %p191 = pneg %p42
        $region34: #{tpu_custom_call.1} parent=31 // pred_check_branch
          %193 = sbr.rel (%p191) target = $region36
        $region35: #{tpu_custom_call.1} parent=31 // pred_region
          %195 = dma.done %s187, 256
        $region36: #{tpu_custom_call.1} parent=31 // pred_fallthru
          _
        // Predicated region
        $region37: #{tpu_custom_call.1} parent=31 // pred_check
          %p196 = pneg %p63
        $region38: #{tpu_custom_call.1} parent=31 // pred_check_branch
          %198 = sbr.rel (%p196) target = $region40
        $region39: #{tpu_custom_call.1} parent=31 // pred_region
          %200 = dma.done [#allocation6], 12288
        $region40: #{tpu_custom_call.1} parent=31 // pred_fallthru
          _
        // Predicated region
        $region41: #{tpu_custom_call.1} parent=31 // pred_check
          %p201 = pneg %p84
        $region42: #{tpu_custom_call.1} parent=31 // pred_check_branch
          %203 = sbr.rel (%p201) target = $region44
        $region43: #{tpu_custom_call.1} parent=31 // pred_region
          %205 = dma.done [#allocation6], 96
        $region44: #{tpu_custom_call.1} parent=31 // pred_fallthru
          _
        %s206 = sand.u32 %s29, 1
        %s207 = scalar_lea.sflag [#allocation3], %s206
        %s208 = sand.u32 %s29, 1
        %s209 = smul.addr %s208, 16
        %s210 = scalar_lea.vmem [#allocation2], %s209
        %p211 = pneg %p42
        %p212 = pneg %p39
        %p213 = pneg %p63
        %p214 = pneg %p60
        %p215 = pneg %p84
        %p216 = pneg %p81
        %p217 = pneg %p110
        %p218 = pneg %p107
        %s219 = sand.u32 %s97, 1
        %s220 = scalar_lea.sflag [#allocation4], %s219
        %s221 = sand.u32 %s97, 1
        %s222 = smul.addr %s221, 16
        %s223 = scalar_lea.vmem [#allocation8], %s222
        %s224 = smul.u32 4, %s21
        %s225 = smul.u32 4, %s21
        %v226 = vld [vmem:[%s190] sm:$0xf]
        %v227 = vld [vmem:[%s190 + $0x4] sm:$0xf]
        %v228 = vld [vmem:[%s190 + $0x8] sm:$0xf]
        %v229 = vld [vmem:[%s190 + $0xc] sm:$0xf]
        %v230 = vld [vmem:[#allocation5] sm:$0xff]
        %v231 = vld [vmem:[#allocation5 + $0x8] sm:$0xff]
        %v232 = vld [vmem:[#allocation5 + $0x10] sm:$0xff]
        %v233 = vld [vmem:[#allocation5 + $0x18] sm:$0xff]
        %v234 = vld [vmem:[#allocation5 + $0x20] sm:$0xff]
        %v235 = vld [vmem:[#allocation5 + $0x28] sm:$0xff]
        %v236 = vld [vmem:[#allocation5 + $0x30] sm:$0xff]
        %v237 = vld [vmem:[#allocation5 + $0x38] sm:$0xff]
        %v238 = vld [vmem:[#allocation5 + $0x40] sm:$0xff]
        %v239 = vld [vmem:[#allocation5 + $0x48] sm:$0xff]
        %v240 = vld [vmem:[#allocation5 + $0x50] sm:$0xff]
        %v241 = vld [vmem:[#allocation5 + $0x58] sm:$0xff]
        %v242 = vld [vmem:[#allocation5 + $0x60] sm:$0xff]
        %v243 = vld [vmem:[#allocation5 + $0x68] sm:$0xff]
        %v244 = vld [vmem:[#allocation5 + $0x70] sm:$0xff]
        %v245 = vld [vmem:[#allocation5 + $0x78] sm:$0xff]
        %v246 = vld [vmem:[#allocation7] sm:$0x3]
        %v248 = vperm.slane %v246, 0
        %v249 = vperm.slane %v246, 1
        %v256 = vunpack.c.l.b16 %v226
        %v257 = vunpack.c.l.b16 %v227
        %v258 = vunpack.c.l.b16 %v228
        %v259 = vunpack.c.l.b16 %v229
        %v260 = vpack.c.b16 %v257, %v256
        %v261 = vpack.c.b16 %v259, %v258
        %v280 = vunpack.c.l.b16 %v230
        %v281 = vunpack.c.h.b16 %v230
        %v282 = vunpack.c.l.b16 %v231
        %v283 = vunpack.c.h.b16 %v231
        %v284 = vunpack.c.l.b16 %v232
        %v285 = vunpack.c.h.b16 %v232
        %v286 = vunpack.c.l.b16 %v233
        %v287 = vunpack.c.h.b16 %v233
        %v288 = vunpack.c.l.b16 %v234
        %v289 = vunpack.c.h.b16 %v234
        %v290 = vunpack.c.l.b16 %v235
        %v291 = vunpack.c.h.b16 %v235
        %v292 = vunpack.c.l.b16 %v236
        %v293 = vunpack.c.h.b16 %v236
        %v294 = vunpack.c.l.b16 %v237
        %v295 = vunpack.c.h.b16 %v237
        %v296 = vunpack.c.l.b16 %v238
        %v297 = vunpack.c.h.b16 %v238
        %v298 = vunpack.c.l.b16 %v239
        %v299 = vunpack.c.h.b16 %v239
        %v300 = vunpack.c.l.b16 %v240
        %v301 = vunpack.c.h.b16 %v240
        %v302 = vunpack.c.l.b16 %v241
        %v303 = vunpack.c.h.b16 %v241
        %v304 = vunpack.c.l.b16 %v242
        %v305 = vunpack.c.h.b16 %v242
        %v306 = vunpack.c.l.b16 %v243
        %v307 = vunpack.c.h.b16 %v243
        %v308 = vunpack.c.l.b16 %v244
        %v309 = vunpack.c.h.b16 %v244
        %v310 = vunpack.c.l.b16 %v245
        %v311 = vunpack.c.h.b16 %v245
        %v312 = vpack.c.b16 %v282, %v280
        %v313 = vpack.c.b16 %v283, %v281
        %v314 = vpack.c.b16 %v286, %v284
        %v315 = vpack.c.b16 %v287, %v285
        %v316 = vpack.c.b16 %v290, %v288
        %v317 = vpack.c.b16 %v291, %v289
        %v318 = vpack.c.b16 %v294, %v292
        %v319 = vpack.c.b16 %v295, %v293
        %v320 = vpack.c.b16 %v298, %v296
        %v321 = vpack.c.b16 %v299, %v297
        %v322 = vpack.c.b16 %v302, %v300
        %v323 = vpack.c.b16 %v303, %v301
        %v324 = vpack.c.b16 %v306, %v304
        %v325 = vpack.c.b16 %v307, %v305
        %v326 = vpack.c.b16 %v310, %v308
        %v327 = vpack.c.b16 %v311, %v309
        %344 = vmatpush.bf16.msra.mxu0 %v326
        %345 = vmatpush.bf16.msra.mxu0 %v324
        %346 = vmatpush.bf16.msra.mxu0 %v322
        %347 = vmatpush.bf16.msra.mxu0 %v320
        %348 = vmatpush.bf16.msra.mxu0 %v318
        %349 = vmatpush.bf16.msra.mxu0 %v316
        %350 = vmatpush.bf16.msra.mxu0 %v314
        %351 = vmatpush.bf16.msra.mxu0 %v312
        %352 = vmatmul.bf16.gmra.mxu0 %v260
        %v353 = vpop.f32.mrf.mxu0
        %v354 = vadd.f32 %v248, %v353
        %v355 = vpop.f32.mrf.mxu0
        %v356 = vadd.f32 %v248, %v355
        %357 = vmatmul.bf16.gmra.mxu0 %v261
        %v358 = vpop.f32.mrf.mxu0
        %v359 = vadd.f32 %v248, %v358
        %v360 = vpop.f32.mrf.mxu0
        %v361 = vadd.f32 %v248, %v360
        %362 = vdwg.mxu0
        %363 = vmatpush.bf16.msra.mxu0 %v327
        %364 = vmatpush.bf16.msra.mxu0 %v325
        %365 = vmatpush.bf16.msra.mxu0 %v323
        %366 = vmatpush.bf16.msra.mxu0 %v321
        %367 = vmatpush.bf16.msra.mxu0 %v319
        %368 = vmatpush.bf16.msra.mxu0 %v317
        %369 = vmatpush.bf16.msra.mxu0 %v315
        %370 = vmatpush.bf16.msra.mxu0 %v313
        %371 = vmatmul.bf16.gmra.mxu0 %v260
        %v372 = vpop.f32.mrf.mxu0
        %v373 = vadd.f32 %v249, %v372
        %v374 = vpop.f32.mrf.mxu0
        %v375 = vadd.f32 %v249, %v374
        %376 = vmatmul.bf16.gmra.mxu0 %v261
        %v377 = vpop.f32.mrf.mxu0
        %v378 = vadd.f32 %v249, %v377
        %v379 = vpop.f32.mrf.mxu0
        %v380 = vadd.f32 %v249, %v379
        %381 = vdwg.mxu0
        %v382 = vtanh.pop %v354
        %v383 = vtanh.pop %v373
        %v384 = vtanh.pop %v356
        %v385 = vtanh.pop %v375
        %v386 = vtanh.pop %v359
        %v387 = vtanh.pop %v378
        %v388 = vtanh.pop %v361
        %v389 = vtanh.pop %v380
        %v390 = vpack.c.bf16 %v384, %v382
        %v391 = vpack.c.bf16 %v385, %v383
        %v392 = vpack.c.bf16 %v388, %v386
        %v393 = vpack.c.bf16 %v389, %v387
        %s394 = scalar_lea.vmem [#allocation5], 256
        %v395 = vld [vmem:[%s394] sm:$0xff]
        %v396 = vld [vmem:[%s394 + $0x8] sm:$0xff]
        %v397 = vld [vmem:[%s394 + $0x10] sm:$0xff]
        %v398 = vld [vmem:[%s394 + $0x18] sm:$0xff]
        %v399 = vld [vmem:[%s394 + $0x20] sm:$0xff]
        %v400 = vld [vmem:[%s394 + $0x28] sm:$0xff]
        %v401 = vld [vmem:[%s394 + $0x30] sm:$0xff]
        %v402 = vld [vmem:[%s394 + $0x38] sm:$0xff]
        %v403 = vld [vmem:[%s394 + $0x40] sm:$0xff]
        %v404 = vld [vmem:[%s394 + $0x48] sm:$0xff]
        %v405 = vld [vmem:[%s394 + $0x50] sm:$0xff]
        %v406 = vld [vmem:[%s394 + $0x58] sm:$0xff]
        %v407 = vld [vmem:[%s394 + $0x60] sm:$0xff]
        %v408 = vld [vmem:[%s394 + $0x68] sm:$0xff]
        %v409 = vld [vmem:[%s394 + $0x70] sm:$0xff]
        %v410 = vld [vmem:[%s394 + $0x78] sm:$0xff]
        %v411 = vld [vmem:[%s394 + $0x80] sm:$0xff]
        %v412 = vld [vmem:[%s394 + $0x88] sm:$0xff]
        %v413 = vld [vmem:[%s394 + $0x90] sm:$0xff]
        %v414 = vld [vmem:[%s394 + $0x98] sm:$0xff]
        %v415 = vld [vmem:[%s394 + $0xa0] sm:$0xff]
        %v416 = vld [vmem:[%s394 + $0xa8] sm:$0xff]
        %v417 = vld [vmem:[%s394 + $0xb0] sm:$0xff]
        %v418 = vld [vmem:[%s394 + $0xb8] sm:$0xff]
        %v419 = vld [vmem:[%s394 + $0xc0] sm:$0xff]
        %v420 = vld [vmem:[%s394 + $0xc8] sm:$0xff]
        %v421 = vld [vmem:[%s394 + $0xd0] sm:$0xff]
        %v422 = vld [vmem:[%s394 + $0xd8] sm:$0xff]
        %v423 = vld [vmem:[%s394 + $0xe0] sm:$0xff]
        %v424 = vld [vmem:[%s394 + $0xe8] sm:$0xff]
        %v425 = vld [vmem:[%s394 + $0xf0] sm:$0xff]
        %v426 = vld [vmem:[%s394 + $0xf8] sm:$0xff]
        %s427 = scalar_lea.vmem [#allocation7], 2
        %v428 = vld [vmem:[%s427] sm:$0x3]
        %v430 = vperm.slane %v428, 0
        %v431 = vperm.slane %v428, 1
        %v466 = vunpack.c.l.b16 %v395
        %v467 = vunpack.c.h.b16 %v395
        %v468 = vunpack.c.l.b16 %v396
        %v469 = vunpack.c.h.b16 %v396
        %v470 = vunpack.c.l.b16 %v397
        %v471 = vunpack.c.h.b16 %v397
        %v472 = vunpack.c.l.b16 %v398
        %v473 = vunpack.c.h.b16 %v398
        %v474 = vunpack.c.l.b16 %v399
        %v475 = vunpack.c.h.b16 %v399
        %v476 = vunpack.c.l.b16 %v400
        %v477 = vunpack.c.h.b16 %v400
        %v478 = vunpack.c.l.b16 %v401
        %v479 = vunpack.c.h.b16 %v401
        %v480 = vunpack.c.l.b16 %v402
        %v481 = vunpack.c.h.b16 %v402
        %v482 = vunpack.c.l.b16 %v403
        %v483 = vunpack.c.h.b16 %v403
        %v484 = vunpack.c.l.b16 %v404
        %v485 = vunpack.c.h.b16 %v404
        %v486 = vunpack.c.l.b16 %v405
        %v487 = vunpack.c.h.b16 %v405
        %v488 = vunpack.c.l.b16 %v406
        %v489 = vunpack.c.h.b16 %v406
        %v490 = vunpack.c.l.b16 %v407
        %v491 = vunpack.c.h.b16 %v407
        %v492 = vunpack.c.l.b16 %v408
        %v493 = vunpack.c.h.b16 %v408
        %v494 = vunpack.c.l.b16 %v409
        %v495 = vunpack.c.h.b16 %v409
        %v496 = vunpack.c.l.b16 %v410
        %v497 = vunpack.c.h.b16 %v410
        %v498 = vunpack.c.l.b16 %v411
        %v499 = vunpack.c.h.b16 %v411
        %v500 = vunpack.c.l.b16 %v412
        %v501 = vunpack.c.h.b16 %v412
        %v502 = vunpack.c.l.b16 %v413
        %v503 = vunpack.c.h.b16 %v413
        %v504 = vunpack.c.l.b16 %v414
        %v505 = vunpack.c.h.b16 %v414
        %v506 = vunpack.c.l.b16 %v415
        %v507 = vunpack.c.h.b16 %v415
        %v508 = vunpack.c.l.b16 %v416
        %v509 = vunpack.c.h.b16 %v416
        %v510 = vunpack.c.l.b16 %v417
        %v511 = vunpack.c.h.b16 %v417
        %v512 = vunpack.c.l.b16 %v418
        %v513 = vunpack.c.h.b16 %v418
        %v514 = vunpack.c.l.b16 %v419
        %v515 = vunpack.c.h.b16 %v419
        %v516 = vunpack.c.l.b16 %v420
        %v517 = vunpack.c.h.b16 %v420
        %v518 = vunpack.c.l.b16 %v421
        %v519 = vunpack.c.h.b16 %v421
        %v520 = vunpack.c.l.b16 %v422
        %v521 = vunpack.c.h.b16 %v422
        %v522 = vunpack.c.l.b16 %v423
        %v523 = vunpack.c.h.b16 %v423
        %v524 = vunpack.c.l.b16 %v424
        %v525 = vunpack.c.h.b16 %v424
        %v526 = vunpack.c.l.b16 %v425
        %v527 = vunpack.c.h.b16 %v425
        %v528 = vunpack.c.l.b16 %v426
        %v529 = vunpack.c.h.b16 %v426
        %v530 = vpack.c.b16 %v468, %v466
        %v531 = vpack.c.b16 %v469, %v467
        %v532 = vpack.c.b16 %v472, %v470
        %v533 = vpack.c.b16 %v473, %v471
        %v534 = vpack.c.b16 %v476, %v474
        %v535 = vpack.c.b16 %v477, %v475
        %v536 = vpack.c.b16 %v480, %v478
        %v537 = vpack.c.b16 %v481, %v479
        %v538 = vpack.c.b16 %v484, %v482
        %v539 = vpack.c.b16 %v485, %v483
        %v540 = vpack.c.b16 %v488, %v486
        %v541 = vpack.c.b16 %v489, %v487
        %v542 = vpack.c.b16 %v492, %v490
        %v543 = vpack.c.b16 %v493, %v491
        %v544 = vpack.c.b16 %v496, %v494
        %v545 = vpack.c.b16 %v497, %v495
        %v546 = vpack.c.b16 %v500, %v498
        %v547 = vpack.c.b16 %v501, %v499
        %v548 = vpack.c.b16 %v504, %v502
        %v549 = vpack.c.b16 %v505, %v503
        %v550 = vpack.c.b16 %v508, %v506
        %v551 = vpack.c.b16 %v509, %v507
        %v552 = vpack.c.b16 %v512, %v510
        %v553 = vpack.c.b16 %v513, %v511
        %v554 = vpack.c.b16 %v516, %v514
        %v555 = vpack.c.b16 %v517, %v515
        %v556 = vpack.c.b16 %v520, %v518
        %v557 = vpack.c.b16 %v521, %v519
        %v558 = vpack.c.b16 %v524, %v522
        %v559 = vpack.c.b16 %v525, %v523
        %v560 = vpack.c.b16 %v528, %v526
        %v561 = vpack.c.b16 %v529, %v527
        %594 = vmatpush.bf16.msra.mxu0 %v544
        %595 = vmatpush.bf16.msra.mxu0 %v542
        %596 = vmatpush.bf16.msra.mxu0 %v540
        %597 = vmatpush.bf16.msra.mxu0 %v538
        %598 = vmatpush.bf16.msra.mxu0 %v536
        %599 = vmatpush.bf16.msra.mxu0 %v534
        %600 = vmatpush.bf16.msra.mxu0 %v532
        %601 = vmatpush.bf16.msra.mxu0 %v530
        %602 = vmatmul.bf16.gmra.mxu0 %v390
        %v603 = vpop.f32.mrf.mxu0
        %v604 = vadd.f32 %v430, %v603
        %v605 = vpop.f32.mrf.mxu0
        %v606 = vadd.f32 %v430, %v605
        %607 = vmatmul.bf16.gmra.mxu0 %v392
        %v608 = vpop.f32.mrf.mxu0
        %v609 = vadd.f32 %v430, %v608
        %v610 = vpop.f32.mrf.mxu0
        %v611 = vadd.f32 %v430, %v610
        %612 = vdwg.mxu0
        %613 = vmatpush.bf16.msra.mxu0 %v560
        %614 = vmatpush.bf16.msra.mxu0 %v558
        %615 = vmatpush.bf16.msra.mxu0 %v556
        %616 = vmatpush.bf16.msra.mxu0 %v554
        %617 = vmatpush.bf16.msra.mxu0 %v552
        %618 = vmatpush.bf16.msra.mxu0 %v550
        %619 = vmatpush.bf16.msra.mxu0 %v548
        %620 = vmatpush.bf16.msra.mxu0 %v546
        %621 = vmatmul.bf16.gmra.mxu0 %v391
        %v622 = vpop.f32.mrf.mxu0
        %v623 = vadd.f32 %v604, %v622
        %v624 = vpop.f32.mrf.mxu0
        %v625 = vadd.f32 %v606, %v624
        %626 = vmatmul.bf16.gmra.mxu0 %v393
        %v627 = vpop.f32.mrf.mxu0
        %v628 = vadd.f32 %v609, %v627
        %v629 = vpop.f32.mrf.mxu0
        %v630 = vadd.f32 %v611, %v629
        %631 = vdwg.mxu0
        %632 = vmatpush.bf16.msra.mxu0 %v545
        %633 = vmatpush.bf16.msra.mxu0 %v543
        %634 = vmatpush.bf16.msra.mxu0 %v541
        %635 = vmatpush.bf16.msra.mxu0 %v539
        %636 = vmatpush.bf16.msra.mxu0 %v537
        %637 = vmatpush.bf16.msra.mxu0 %v535
        %638 = vmatpush.bf16.msra.mxu0 %v533
        %639 = vmatpush.bf16.msra.mxu0 %v531
        %640 = vmatmul.bf16.gmra.mxu0 %v390
        %v641 = vpop.f32.mrf.mxu0
        %v642 = vadd.f32 %v431, %v641
        %v643 = vpop.f32.mrf.mxu0
        %v644 = vadd.f32 %v431, %v643
        %645 = vmatmul.bf16.gmra.mxu0 %v392
        %v646 = vpop.f32.mrf.mxu0
        %v647 = vadd.f32 %v431, %v646
        %v648 = vpop.f32.mrf.mxu0
        %v649 = vadd.f32 %v431, %v648
        %650 = vdwg.mxu0
        %651 = vmatpush.bf16.msra.mxu0 %v561
        %652 = vmatpush.bf16.msra.mxu0 %v559
        %653 = vmatpush.bf16.msra.mxu0 %v557
        %654 = vmatpush.bf16.msra.mxu0 %v555
        %655 = vmatpush.bf16.msra.mxu0 %v553
        %656 = vmatpush.bf16.msra.mxu0 %v551
        %657 = vmatpush.bf16.msra.mxu0 %v549
        %658 = vmatpush.bf16.msra.mxu0 %v547
        %659 = vmatmul.bf16.gmra.mxu0 %v391
        %v660 = vpop.f32.mrf.mxu0
        %v661 = vadd.f32 %v642, %v660
        %v662 = vpop.f32.mrf.mxu0
        %v663 = vadd.f32 %v644, %v662
        %664 = vmatmul.bf16.gmra.mxu0 %v393
        %v665 = vpop.f32.mrf.mxu0
        %v666 = vadd.f32 %v647, %v665
        %v667 = vpop.f32.mrf.mxu0
        %v668 = vadd.f32 %v649, %v667
        %669 = vdwg.mxu0
        %v670 = vtanh.pop %v623
        %v671 = vtanh.pop %v661
        %v672 = vtanh.pop %v625
        %v673 = vtanh.pop %v663
        %v674 = vtanh.pop %v628
        %v675 = vtanh.pop %v666
        %v676 = vtanh.pop %v630
        %v677 = vtanh.pop %v668
        %v678 = vpack.c.bf16 %v672, %v670
        %v679 = vpack.c.bf16 %v673, %v671
        %v680 = vpack.c.bf16 %v676, %v674
        %v681 = vpack.c.bf16 %v677, %v675
        %s682 = scalar_lea.vmem [#allocation5], 512
        %v683 = vld [vmem:[%s682] sm:$0xf]
        %v684 = vld [vmem:[%s682 + $0x8] sm:$0xf]
        %v685 = vld [vmem:[%s682 + $0x10] sm:$0xf]
        %v686 = vld [vmem:[%s682 + $0x18] sm:$0xf]
        %v687 = vld [vmem:[%s682 + $0x20] sm:$0xf]
        %v688 = vld [vmem:[%s682 + $0x28] sm:$0xf]
        %v689 = vld [vmem:[%s682 + $0x30] sm:$0xf]
        %v690 = vld [vmem:[%s682 + $0x38] sm:$0xf]
        %v691 = vld [vmem:[%s682 + $0x40] sm:$0xf]
        %v692 = vld [vmem:[%s682 + $0x48] sm:$0xf]
        %v693 = vld [vmem:[%s682 + $0x50] sm:$0xf]
        %v694 = vld [vmem:[%s682 + $0x58] sm:$0xf]
        %v695 = vld [vmem:[%s682 + $0x60] sm:$0xf]
        %v696 = vld [vmem:[%s682 + $0x68] sm:$0xf]
        %v697 = vld [vmem:[%s682 + $0x70] sm:$0xf]
        %v698 = vld [vmem:[%s682 + $0x78] sm:$0xf]
        %v699 = vld [vmem:[%s682 + $0x80] sm:$0xf]
        %v700 = vld [vmem:[%s682 + $0x88] sm:$0xf]
        %v701 = vld [vmem:[%s682 + $0x90] sm:$0xf]
        %v702 = vld [vmem:[%s682 + $0x98] sm:$0xf]
        %v703 = vld [vmem:[%s682 + $0xa0] sm:$0xf]
        %v704 = vld [vmem:[%s682 + $0xa8] sm:$0xf]
        %v705 = vld [vmem:[%s682 + $0xb0] sm:$0xf]
        %v706 = vld [vmem:[%s682 + $0xb8] sm:$0xf]
        %v707 = vld [vmem:[%s682 + $0xc0] sm:$0xf]
        %v708 = vld [vmem:[%s682 + $0xc8] sm:$0xf]
        %v709 = vld [vmem:[%s682 + $0xd0] sm:$0xf]
        %v710 = vld [vmem:[%s682 + $0xd8] sm:$0xf]
        %v711 = vld [vmem:[%s682 + $0xe0] sm:$0xf]
        %v712 = vld [vmem:[%s682 + $0xe8] sm:$0xf]
        %v713 = vld [vmem:[%s682 + $0xf0] sm:$0xf]
        %v714 = vld [vmem:[%s682 + $0xf8] sm:$0xf]
        %s715 = scalar_lea.vmem [#allocation7], 4
        %v716 = vld [vmem:[%s715] sm:$0x1]
        %v718 = vperm.slane %v716, 0
        %v752 = vunpack.c.l.b16 %v683
        %v753 = vunpack.c.l.b16 %v684
        %v754 = vunpack.c.l.b16 %v685
        %v755 = vunpack.c.l.b16 %v686
        %v756 = vunpack.c.l.b16 %v687
        %v757 = vunpack.c.l.b16 %v688
        %v758 = vunpack.c.l.b16 %v689
        %v759 = vunpack.c.l.b16 %v690
        %v760 = vunpack.c.l.b16 %v691
        %v761 = vunpack.c.l.b16 %v692
        %v762 = vunpack.c.l.b16 %v693
        %v763 = vunpack.c.l.b16 %v694
        %v764 = vunpack.c.l.b16 %v695
        %v765 = vunpack.c.l.b16 %v696
        %v766 = vunpack.c.l.b16 %v697
        %v767 = vunpack.c.l.b16 %v698
        %v768 = vunpack.c.l.b16 %v699
        %v769 = vunpack.c.l.b16 %v700
        %v770 = vunpack.c.l.b16 %v701
        %v771 = vunpack.c.l.b16 %v702
        %v772 = vunpack.c.l.b16 %v703
        %v773 = vunpack.c.l.b16 %v704
        %v774 = vunpack.c.l.b16 %v705
        %v775 = vunpack.c.l.b16 %v706
        %v776 = vunpack.c.l.b16 %v707
        %v777 = vunpack.c.l.b16 %v708
        %v778 = vunpack.c.l.b16 %v709
        %v779 = vunpack.c.l.b16 %v710
        %v780 = vunpack.c.l.b16 %v711
        %v781 = vunpack.c.l.b16 %v712
        %v782 = vunpack.c.l.b16 %v713
        %v783 = vunpack.c.l.b16 %v714
        %v784 = vpack.c.b16 %v753, %v752
        %v785 = vpack.c.b16 %v755, %v754
        %v786 = vpack.c.b16 %v757, %v756
        %v787 = vpack.c.b16 %v759, %v758
        %v788 = vpack.c.b16 %v761, %v760
        %v789 = vpack.c.b16 %v763, %v762
        %v790 = vpack.c.b16 %v765, %v764
        %v791 = vpack.c.b16 %v767, %v766
        %v792 = vpack.c.b16 %v769, %v768
        %v793 = vpack.c.b16 %v771, %v770
        %v794 = vpack.c.b16 %v773, %v772
        %v795 = vpack.c.b16 %v775, %v774
        %v796 = vpack.c.b16 %v777, %v776
        %v797 = vpack.c.b16 %v779, %v778
        %v798 = vpack.c.b16 %v781, %v780
        %v799 = vpack.c.b16 %v783, %v782
        %816 = vmatpush.bf16.msra.mxu0 %v791
        %817 = vmatpush.bf16.msra.mxu0 %v790
        %818 = vmatpush.bf16.msra.mxu0 %v789
        %819 = vmatpush.bf16.msra.mxu0 %v788
        %820 = vmatpush.bf16.msra.mxu0 %v787
        %821 = vmatpush.bf16.msra.mxu0 %v786
        %822 = vmatpush.bf16.msra.mxu0 %v785
        %823 = vmatpush.bf16.msra.mxu0 %v784
        %824 = vmatmul.bf16.gmra.mxu0 %v678
        %v825 = vpop.f32.mrf.mxu0
        %v826 = vadd.f32 %v718, %v825
        %v827 = vpop.f32.mrf.mxu0
        %v828 = vadd.f32 %v718, %v827
        %829 = vmatmul.bf16.gmra.mxu0 %v680
        %v830 = vpop.f32.mrf.mxu0
        %v831 = vadd.f32 %v718, %v830
        %v832 = vpop.f32.mrf.mxu0
        %v833 = vadd.f32 %v718, %v832
        %834 = vdwg.mxu0
        %835 = vmatpush.bf16.msra.mxu0 %v799
        %836 = vmatpush.bf16.msra.mxu0 %v798
        %837 = vmatpush.bf16.msra.mxu0 %v797
        %838 = vmatpush.bf16.msra.mxu0 %v796
        %839 = vmatpush.bf16.msra.mxu0 %v795
        %840 = vmatpush.bf16.msra.mxu0 %v794
        %841 = vmatpush.bf16.msra.mxu0 %v793
        %842 = vmatpush.bf16.msra.mxu0 %v792
        %843 = vmatmul.bf16.gmra.mxu0 %v679
        %v844 = vpop.f32.mrf.mxu0
        %v845 = vadd.f32 %v826, %v844
        %v846 = vpop.f32.mrf.mxu0
        %v847 = vadd.f32 %v828, %v846
        %848 = vmatmul.bf16.gmra.mxu0 %v681
        %v849 = vpop.f32.mrf.mxu0
        %v850 = vadd.f32 %v831, %v849
        %v851 = vpop.f32.mrf.mxu0
        %v852 = vadd.f32 %v833, %v851
        %853 = vdwg.mxu0
        %v854 = vpack.c.bf16 %v845, %v845
        %v855 = vpack.c.bf16 %v847, %v847
        %v856 = vpack.c.bf16 %v850, %v850
        %v857 = vpack.c.bf16 %v852, %v852
        %858 = vst [vmem:[%s223] sm:$0xf] %v854
        %859 = vst [vmem:[%s223 + $0x4] sm:$0xf] %v855
        %860 = vst [vmem:[%s223 + $0x8] sm:$0xf] %v856
        %861 = vst [vmem:[%s223 + $0xc] sm:$0xf] %v857
        %s862 = sand.u32 %s97, 1
        %s863 = scalar_lea.sflag [#allocation4], %s862
        %s864 = sand.u32 %s97, 1
        %s865 = smul.addr %s864, 16
        %s866 = scalar_lea.vmem [#allocation8], %s865
        // Predicated region
        $region45: #{tpu_custom_call.1} parent=31 // pred_check
          %p867 = pneg %p107
        $region46: #{tpu_custom_call.1} parent=31 // pred_check_branch
          %869 = sbr.rel (%p867) target = $region48
        $region47: #{tpu_custom_call.1} parent=31 // pred_region
          %s870 = smul.u32 4, %s21
          %872 = vsyncadd %s863, 0
          %s873 = smul.addr %s870, 4
          %s874 = scalar_lea.hbm %s3, %s873
          %s875 = sshll.u32 %s866, 4
          %s876 = int_to_ptr.vmem [resolvable:$true] %s875
          %s877 = sshll.u32 %s874, 4
          %s878 = int_to_ptr.hbm [resolvable:$true] %s877
          %883 = dma.vmem_to_hbm [thread:$0]  %s876, 256, %s878, %s863, 64, 64, 4
        $region48: #{tpu_custom_call.1} parent=31 // pred_fallthru
          _
      $region32: #{tpu_custom_call.1} parent=5 // pred_fallthru
        _
      %p884 = scmp.le.s32.totalorder 2, %s16
      // Predicated region
      $region49: #{tpu_custom_call.1} parent=5 // pred_check
        %p885 = pneg %p884
      $region50: #{tpu_custom_call.1} parent=5 // pred_check_branch
        %887 = sbr.rel (%p885) target = $region52
      $region51: #{tpu_custom_call.1} parent=5 // pred_region
        %s888 = ssub.s32 %s16, 2
        // Predicated region
        $region53: #{tpu_custom_call.1} parent=51 // pred_check
          %p889 = pneg %p113
        $region54: #{tpu_custom_call.1} parent=51 // pred_check_branch
          %891 = sbr.rel (%p889) target = $region56
        $region55: #{tpu_custom_call.1} parent=51 // pred_region
          %s892 = sand.u32 %s98, 1
          %s893 = scalar_lea.sflag [#allocation4], %s892
          %s894 = sand.u32 %s98, 1
          %s895 = smul.addr %s894, 16
          %s896 = scalar_lea.vmem [#allocation8], %s895
          %898 = dma.done %s893, 256
        $region56: #{tpu_custom_call.1} parent=51 // pred_fallthru
          _
      $region52: #{tpu_custom_call.1} parent=5 // pred_fallthru
        _
    $region6: #{tpu_custom_call.1} parent=1 // loop_footer
      %s20 = sadd.s32 1, %s16
    $region7: #{tpu_custom_call.1} parent=1 // loop_footer_branch
      %15 = sbr.rel target = $region3
    $region8: #{tpu_custom_call.1} parent=1 // loop_exit
      _
    %899 = vsyncpa [#allocation3], 1
    %s900 = scalar_lea.sflag [#allocation3], 1
    %901 = vsyncpa %s900, 1
    %902 = vsyncpa [#allocation6], 1
    %903 = vsyncpa [#allocation4], 1
    %s904 = scalar_lea.sflag [#allocation4], 1
    %905 = vsyncpa %s904, 1

</llo_original>
